<compile_context>
chip_gen: v5e
topology: v5e:2x2
jax: 0.10.0
libtpu: 0.0.40
codegen_flags: <defaults>
</compile_context>

<pallas_src>
import functools
from itertools import product

import jax
import jax.numpy as jnp
from jax.experimental import pallas as pl
from jax.experimental.pallas import tpu as pltpu

EPS = 1e-5


def _repvgg_sse_kernel(x_ref, mask_ref, params_ref, wmain_ref, wse_ref,
                       out_ref, xrow_ref, *, H, W, C, PAD):
    HW = H * W

    # Refresh ONLY the pad strips the 3x3 taps actually read
    # ([PAD-(W+1), PAD) and [PAD+HW, PAD+HW+W+1)); the image region is fully
    # overwritten below.  Unconditional (cheap) so it is megacore-safe.
    strip = jnp.zeros((C, W + 1), dtype=xrow_ref.dtype)
    xrow_ref[:, PAD - (W + 1):PAD] = strip
    xrow_ref[:, PAD + HW:PAD + HW + W + 1] = strip

    # Lane-aligned store of the flattened (row-major) image: offset PAD and
    # length HW are multiples of 128 -> unmasked stores.
    xrow_ref[:, PAD:PAD + HW] = x_ref[...]                      # (C, HW) bf16

    # Column masks (bf16 {0,1}); broadcast once, each reused by 3 taps.
    m_left = jnp.broadcast_to(mask_ref[0:1, :], (C, HW))        # kills column x == 0
    m_right = jnp.broadcast_to(mask_ref[1:2, :], (C, HW))       # kills column x == W-1

    # Fused 3x3 (+1x1 + BNs) branch: nine accumulating K=C bf16 matmuls straight
    # from the row-padded image -- no im2col buffer, f32 register accumulator.
    acc = jnp.zeros((C, HW), jnp.float32)
    center = None
    for k, (dy, dx) in enumerate(product(range(3), range(3))):
        start = PAD - (W + 1) + dy * W + dx
        t = xrow_ref[:, start:start + HW]                       # (C, HW) bf16
        if dx == 0:
            t = t * m_left
        elif dx == 2:
            t = t * m_right
        if (dy, dx) == (1, 1):
            center = t                                          # exact x (bf16)
        acc = acc + jnp.dot(wmain_ref[k], t,
                            preferred_element_type=jnp.float32)  # (C, HW) f32

    # ParSSE branch (its input BN is pre-folded into wse / b_se).
    se = jnp.dot(wse_ref[...], center, preferred_element_type=jnp.float32)
    se = se + params_ref[:, 2:3]
    gate = 1.0 / (1.0 + jnp.exp(-se))                           # exact sigmoid
    x_bn = center.astype(jnp.float32) * params_ref[:, 0:1] + params_ref[:, 1:2]

    s = x_bn * gate + acc + params_ref[:, 3:4]
    out_ref[...] = (s / (1.0 + jnp.exp(-s))).astype(out_ref.dtype)   # SiLU, exact


def repvgg_sse_block(x_nchw, params, w_main, w_se):
    """x_nchw: (N, C, H, W), any float dtype (bf16 preferred).
    Returns (N, C, H, W) bf16 (activation stream stays bf16 at the HBM boundary)."""
    N, C, H, W = x_nchw.shape
    HW = H * W
    PAD = ((W + 1 + 127) // 128) * 128   # >= W+1 AND keeps the image store lane-aligned
    assert PAD >= W + 1, "flat-row boundary handling requires PAD >= W+1"
    assert HW % 128 == 0, "H*W must be a multiple of 128 for lane-dense blocks"

    # Free contiguous reshape (no HBM pass); pixels land on the 128-lane axis.
    x_flat = x_nchw.astype(jnp.bfloat16).reshape(N, C, HW)

    # Column masks for the left/right 3x3 taps (row padding alone cannot express them).
    col = jnp.arange(HW, dtype=jnp.int32) % W
    masks = jnp.stack([col != 0, col != (W - 1)], axis=0).astype(jnp.bfloat16)  # (2, HW)

    kern = functools.partial(_repvgg_sse_kernel, H=H, W=W, C=C, PAD=PAD)
    out_flat = pl.pallas_call(
        kern,
        out_shape=jax.ShapeDtypeStruct((N, C, HW), jnp.bfloat16),
        grid_spec=pltpu.PrefetchScalarGridSpec(
            num_scalar_prefetch=0,
            grid=(N,),
            in_specs=[
                pl.BlockSpec((pl.Squeezed(), C, HW), lambda n: (n, 0, 0)),  # x (flat NCHW), bf16
                pl.BlockSpec((2, HW), lambda n: (0, 0)),                    # column masks, bf16
                pl.BlockSpec((C, 4), lambda n: (0, 0)),                     # [scale0|shift0|b_se|b_main] f32
                pl.BlockSpec((9, C, C), lambda n: (0, 0, 0)),               # per-tap fused 3x3(+1x1) weights, bf16
                pl.BlockSpec((C, C), lambda n: (0, 0)),                     # fused SE weights, bf16
            ],
            out_specs=pl.BlockSpec((pl.Squeezed(), C, HW), lambda n: (n, 0, 0)),
            scratch_shapes=[
                pltpu.VMEM((C, 2 * PAD + HW), jnp.bfloat16),                # row-padded flat image
            ],
        ),
        compiler_params=pltpu.CompilerParams(
            dimension_semantics=("parallel",)),                             # batch iters independent
    )(x_flat, masks, params, w_main, w_se)
    return out_flat.reshape(N, C, H, W)


def make_params(key, C):
    """Synthetic parameters (PyTorch shape conventions), then fold BNs into the convs."""
    ks = jax.random.split(key, 16)
    # ParSSE BN
    g0 = jax.random.uniform(ks[0], (C,), minval=0.5, maxval=1.5)
    b0 = jax.random.normal(ks[1], (C,)) * 0.1
    m0 = jax.random.normal(ks[2], (C,)) * 0.1
    v0 = jax.random.uniform(ks[3], (C,), minval=0.5, maxval=1.5)
    # ParSSE 1x1 conv (bias=True, no norm)
    w_se_t = jax.random.normal(ks[4], (C, C, 1, 1)) * 0.3        # (Cout, Cin, 1, 1)
    b_se = jax.random.normal(ks[5], (C,)) * 0.1
    # conv1x1bn
    w1_t = jax.random.normal(ks[6], (C, C, 1, 1)) * 0.3
    g1 = jax.random.uniform(ks[7], (C,), minval=0.5, maxval=1.5)
    b1 = jax.random.normal(ks[8], (C,)) * 0.1
    m1 = jax.random.normal(ks[9], (C,)) * 0.1
    v1 = jax.random.uniform(ks[10], (C,), minval=0.5, maxval=1.5)
    # conv3x3bn
    w3_t = jax.random.normal(ks[11], (C, C, 3, 3)) * 0.1         # (Cout, Cin, 3, 3)
    g3 = jax.random.uniform(ks[12], (C,), minval=0.5, maxval=1.5)
    b3 = jax.random.normal(ks[13], (C,)) * 0.1
    m3 = jax.random.normal(ks[14], (C,)) * 0.1
    v3 = jax.random.uniform(ks[15], (C,), minval=0.5, maxval=1.5)

    def fuse_bn(g, b, m, v):
        scale = g / jnp.sqrt(v + EPS)
        return scale, b - m * scale

    s0, sh0 = fuse_bn(g0, b0, m0, v0)
    s1, sh1 = fuse_bn(g1, b1, m1, v1)
    s3, sh3 = fuse_bn(g3, b3, m3, v3)

    # ParSSE: fold the input BN into the SE 1x1 conv.
    w_se2d = w_se_t[:, :, 0, 0]                                  # (Cout, Cin)
    w_se_f = w_se2d * s0[None, :]
    b_se_f = b_se + w_se2d @ sh0

    # 1x1/3x3 branches: fold the output BN scale into the weights and merge the
    # 1x1 conv into the centre tap of the 3x3 kernel.
    w1_f = w1_t[:, :, 0, 0] * s1[:, None]
    w3_f = w3_t * s3[:, None, None, None]
    w3_f = w3_f.at[:, :, 1, 1].add(w1_f)
    b_main = sh1 + sh3

    # (Cout, Cin, ky, kx) -> (tap k = ky*3+kx, Cout, Cin)
    w_main = jnp.transpose(w3_f, (2, 3, 0, 1)).reshape(9, C, C)

    params = jnp.stack([s0, sh0, b_se_f, b_main], axis=1).astype(jnp.float32)  # (C, 4)

    raw = dict(g0=g0, b0=b0, m0=m0, v0=v0, w_se_t=w_se_t, b_se=b_se,
               w1_t=w1_t, g1=g1, b1=b1, m1=m1, v1=v1,
               w3_t=w3_t, g3=g3, b3=b3, m3=m3, v3=v3)
    return (params, w_main.astype(jnp.bfloat16), w_se_f.astype(jnp.bfloat16)), raw


def reference(x, raw):
    """Pure-JAX f32 reference (NCHW, PyTorch semantics, eval-mode BN)."""
    dn = ('NCHW', 'OIHW', 'NCHW')
    hi = jax.lax.Precision.HIGHEST

    def bn(y, g, b, m, v):
        sc = (g / jnp.sqrt(v + EPS))[None, :, None, None]
        return (y - m[None, :, None, None]) * sc + b[None, :, None, None]

    x_bn = bn(x, raw['g0'], raw['b0'], raw['m0'], raw['v0'])
    se = jax.lax.conv_general_dilated(x_bn, raw['w_se_t'], (1, 1), 'VALID',
                                      dimension_numbers=dn, precision=hi)
    se = se + raw['b_se'][None, :, None, None]
    sse_out = x_bn * jax.nn.sigmoid(se)
    y1 = bn(jax.lax.conv_general_dilated(x, raw['w1_t'], (1, 1), 'VALID',
                                         dimension_numbers=dn, precision=hi),
            raw['g1'], raw['b1'], raw['m1'], raw['v1'])
    y3 = bn(jax.lax.conv_general_dilated(x, raw['w3_t'], (1, 1),
                                         ((1, 1), (1, 1)),
                                         dimension_numbers=dn, precision=hi),
            raw['g3'], raw['b3'], raw['m3'], raw['v3'])
    s = sse_out + y1 + y3
    return s * jax.nn.sigmoid(s)


if __name__ == "__main__":
    N, C, H, W = 2, 4, 16, 16   # in_channels == out_channels (required by ParSSE gating + branch sum)
    key = jax.random.PRNGKey(0)
    kx, kp = jax.random.split(key)
    x_f32 = jax.random.normal(kx, (N, C, H, W), dtype=jnp.float32)
    x_bf16 = x_f32.astype(jnp.bfloat16)      # activations live in bf16 at the HBM boundary

    (params, w_main, w_se), raw = make_params(kp, C)

    out = jax.block_until_ready(repvgg_sse_block(x_bf16, params, w_main, w_se))
    # Reference sees the same (bf16-rounded) input values, computed in f32.
    ref = jax.block_until_ready(reference(x_bf16.astype(jnp.float32), raw))

    assert out.shape == (N, C, H, W)
    assert out.dtype == jnp.bfloat16
    out_f32 = out.astype(jnp.float32)
    # bf16 weights/activations (f32 accumulation + exact sigmoid/SiLU) vs f32 reference.
    assert jnp.allclose(out_f32, ref, rtol=5e-2, atol=5e-2), \
        f"max abs err {jnp.max(jnp.abs(out_f32 - ref))}"

    print("KERNEL_OK")
</pallas_src>

<mosaic_0001>
module attributes {stable_mosaic.version = 11 : i64} {
  func.func @_repvgg_sse_kernel(%arg0: i32, %arg1: memref<1x4x256xbf16, #tpu.memory_space<vmem>>, %arg2: memref<2x256xbf16, #tpu.memory_space<vmem>>, %arg3: memref<4x4xf32, #tpu.memory_space<vmem>>, %arg4: memref<9x4x4xbf16, #tpu.memory_space<vmem>>, %arg5: memref<4x4xbf16, #tpu.memory_space<vmem>>, %arg6: memref<1x4x256xbf16, #tpu.memory_space<vmem>>, %arg7: memref<4x512xbf16, #tpu.memory_space<vmem>>) attributes {dimension_semantics = [#tpu.dimension_semantics<parallel>], iteration_bounds = array<i64: 2>, scalar_prefetch = 0 : i64, scratch_operands = 1 : i64, tpu.core_type = #tpu.core_type<tc>, window_params = [{transform_indices = @transform_0, window_bounds = array<i64: 1, 4, 256>}, {pipeline_mode = #tpu.pipeline_mode<synchronous>, transform_indices = @transform_1, window_bounds = array<i64: 2, 256>}, {pipeline_mode = #tpu.pipeline_mode<synchronous>, transform_indices = @transform_2, window_bounds = array<i64: 4, 4>}, {pipeline_mode = #tpu.pipeline_mode<synchronous>, transform_indices = @transform_3, window_bounds = array<i64: 9, 4, 4>}, {pipeline_mode = #tpu.pipeline_mode<synchronous>, transform_indices = @transform_4, window_bounds = array<i64: 4, 4>}, {transform_indices = @transform_5, window_bounds = array<i64: 1, 4, 256>}]} {
    %cst = arith.constant 0.000000e+00 : bf16
    %0 = vector.broadcast %cst : bf16 to vector<4x17xbf16>
    %c0 = arith.constant 0 : index
    %c111 = arith.constant 111 : index
    %1 = vector.load %arg7[%c0, %c111] : memref<4x512xbf16, #tpu.memory_space<vmem>>, vector<4x17xbf16>
    tpu.vector_store %arg7[%c0, %c111], %0 {strides = array<i32>} : memref<4x512xbf16, #tpu.memory_space<vmem>>, vector<4x17xbf16>,
    %c0_0 = arith.constant 0 : index
    %c384 = arith.constant 384 : index
    %2 = vector.load %arg7[%c0_0, %c384] : memref<4x512xbf16, #tpu.memory_space<vmem>>, vector<4x17xbf16>
    tpu.vector_store %arg7[%c0_0, %c384], %0 {strides = array<i32>} : memref<4x512xbf16, #tpu.memory_space<vmem>>, vector<4x17xbf16>,
    %c0_1 = arith.constant 0 : index
    %c0_2 = arith.constant 0 : index
    %c0_3 = arith.constant 0 : index
    %3 = vector.load %arg1[%c0_1, %c0_2, %c0_3] : memref<1x4x256xbf16, #tpu.memory_space<vmem>>, vector<1x4x256xbf16>
    %4 = vector.shape_cast %3 : vector<1x4x256xbf16> to vector<4x256xbf16>
    %c0_4 = arith.constant 0 : index
    %c128 = arith.constant 128 : index
    %5 = vector.load %arg7[%c0_4, %c128] : memref<4x512xbf16, #tpu.memory_space<vmem>>, vector<4x256xbf16>
    tpu.vector_store %arg7[%c0_4, %c128], %4 {strides = array<i32>} : memref<4x512xbf16, #tpu.memory_space<vmem>>, vector<4x256xbf16>,
    %c0_5 = arith.constant 0 : index
    %c0_6 = arith.constant 0 : index
    %6 = vector.load %arg2[%c0_5, %c0_6] : memref<2x256xbf16, #tpu.memory_space<vmem>>, vector<1x256xbf16>
    %7 = vector.shape_cast %6 : vector<1x256xbf16> to vector<1x256xbf16>
    %8 = vector.broadcast %7 : vector<1x256xbf16> to vector<4x256xbf16>
    %c1 = arith.constant 1 : index
    %c0_7 = arith.constant 0 : index
    %9 = vector.load %arg2[%c1, %c0_7] : memref<2x256xbf16, #tpu.memory_space<vmem>>, vector<1x256xbf16>
    %10 = vector.shape_cast %9 : vector<1x256xbf16> to vector<1x256xbf16>
    %11 = vector.broadcast %10 : vector<1x256xbf16> to vector<4x256xbf16>
    %cst_8 = arith.constant 0.000000e+00 : f32
    %12 = vector.broadcast %cst_8 : f32 to vector<4x256xf32>
    %c0_9 = arith.constant 0 : index
    %c111_10 = arith.constant 111 : index
    %13 = vector.load %arg7[%c0_9, %c111_10] : memref<4x512xbf16, #tpu.memory_space<vmem>>, vector<4x256xbf16>
    %14 = arith.mulf %13, %8 : vector<4x256xbf16>
    %c0_11 = arith.constant 0 : index
    %c0_12 = arith.constant 0 : index
    %c0_13 = arith.constant 0 : index
    %15 = vector.load %arg4[%c0_11, %c0_12, %c0_13] : memref<9x4x4xbf16, #tpu.memory_space<vmem>>, vector<1x4x4xbf16>
    %16 = vector.shape_cast %15 : vector<1x4x4xbf16> to vector<4x4xbf16>
    %cst_14 = arith.constant dense<0.000000e+00> : vector<4x256xf32>
    %17 = tpu.matmul %16, %14, %cst_14 {dimension_numbers = #tpu.dot_dimension_numbers<[1], [0], [0], [1], [0, 0, 1, 1], [], []>} : vector<4x4xbf16>, vector<4x256xbf16>, vector<4x256xf32> -> vector<4x256xf32>
    %18 = arith.addf %12, %17 : vector<4x256xf32>
    %c0_15 = arith.constant 0 : index
    %c112 = arith.constant 112 : index
    %19 = vector.load %arg7[%c0_15, %c112] : memref<4x512xbf16, #tpu.memory_space<vmem>>, vector<4x256xbf16>
    %c1_16 = arith.constant 1 : index
    %c0_17 = arith.constant 0 : index
    %c0_18 = arith.constant 0 : index
    %20 = vector.load %arg4[%c1_16, %c0_17, %c0_18] : memref<9x4x4xbf16, #tpu.memory_space<vmem>>, vector<1x4x4xbf16>
    %21 = vector.shape_cast %20 : vector<1x4x4xbf16> to vector<4x4xbf16>
    %cst_19 = arith.constant dense<0.000000e+00> : vector<4x256xf32>
    %22 = tpu.matmul %21, %19, %cst_19 {dimension_numbers = #tpu.dot_dimension_numbers<[1], [0], [0], [1], [0, 0, 1, 1], [], []>} : vector<4x4xbf16>, vector<4x256xbf16>, vector<4x256xf32> -> vector<4x256xf32>
    %23 = arith.addf %18, %22 : vector<4x256xf32>
    %c0_20 = arith.constant 0 : index
    %c113 = arith.constant 113 : index
    %24 = vector.load %arg7[%c0_20, %c113] : memref<4x512xbf16, #tpu.memory_space<vmem>>, vector<4x256xbf16>
    %25 = arith.mulf %24, %11 : vector<4x256xbf16>
    %c2 = arith.constant 2 : index
    %c0_21 = arith.constant 0 : index
    %c0_22 = arith.constant 0 : index
    %26 = vector.load %arg4[%c2, %c0_21, %c0_22] : memref<9x4x4xbf16, #tpu.memory_space<vmem>>, vector<1x4x4xbf16>
    %27 = vector.shape_cast %26 : vector<1x4x4xbf16> to vector<4x4xbf16>
    %cst_23 = arith.constant dense<0.000000e+00> : vector<4x256xf32>
    %28 = tpu.matmul %27, %25, %cst_23 {dimension_numbers = #tpu.dot_dimension_numbers<[1], [0], [0], [1], [0, 0, 1, 1], [], []>} : vector<4x4xbf16>, vector<4x256xbf16>, vector<4x256xf32> -> vector<4x256xf32>
    %29 = arith.addf %23, %28 : vector<4x256xf32>
    %c0_24 = arith.constant 0 : index
    %c127 = arith.constant 127 : index
    %30 = vector.load %arg7[%c0_24, %c127] : memref<4x512xbf16, #tpu.memory_space<vmem>>, vector<4x256xbf16>
    %31 = arith.mulf %30, %8 : vector<4x256xbf16>
    %c3 = arith.constant 3 : index
    %c0_25 = arith.constant 0 : index
    %c0_26 = arith.constant 0 : index
    %32 = vector.load %arg4[%c3, %c0_25, %c0_26] : memref<9x4x4xbf16, #tpu.memory_space<vmem>>, vector<1x4x4xbf16>
    %33 = vector.shape_cast %32 : vector<1x4x4xbf16> to vector<4x4xbf16>
    %cst_27 = arith.constant dense<0.000000e+00> : vector<4x256xf32>
    %34 = tpu.matmul %33, %31, %cst_27 {dimension_numbers = #tpu.dot_dimension_numbers<[1], [0], [0], [1], [0, 0, 1, 1], [], []>} : vector<4x4xbf16>, vector<4x256xbf16>, vector<4x256xf32> -> vector<4x256xf32>
    %35 = arith.addf %29, %34 : vector<4x256xf32>
    %c0_28 = arith.constant 0 : index
    %c128_29 = arith.constant 128 : index
    %36 = vector.load %arg7[%c0_28, %c128_29] : memref<4x512xbf16, #tpu.memory_space<vmem>>, vector<4x256xbf16>
    %c4 = arith.constant 4 : index
    %c0_30 = arith.constant 0 : index
    %c0_31 = arith.constant 0 : index
    %37 = vector.load %arg4[%c4, %c0_30, %c0_31] : memref<9x4x4xbf16, #tpu.memory_space<vmem>>, vector<1x4x4xbf16>
    %38 = vector.shape_cast %37 : vector<1x4x4xbf16> to vector<4x4xbf16>
    %cst_32 = arith.constant dense<0.000000e+00> : vector<4x256xf32>
    %39 = tpu.matmul %38, %36, %cst_32 {dimension_numbers = #tpu.dot_dimension_numbers<[1], [0], [0], [1], [0, 0, 1, 1], [], []>} : vector<4x4xbf16>, vector<4x256xbf16>, vector<4x256xf32> -> vector<4x256xf32>
    %40 = arith.addf %35, %39 : vector<4x256xf32>
    %c0_33 = arith.constant 0 : index
    %c129 = arith.constant 129 : index
    %41 = vector.load %arg7[%c0_33, %c129] : memref<4x512xbf16, #tpu.memory_space<vmem>>, vector<4x256xbf16>
    %42 = arith.mulf %41, %11 : vector<4x256xbf16>
    %c5 = arith.constant 5 : index
    %c0_34 = arith.constant 0 : index
    %c0_35 = arith.constant 0 : index
    %43 = vector.load %arg4[%c5, %c0_34, %c0_35] : memref<9x4x4xbf16, #tpu.memory_space<vmem>>, vector<1x4x4xbf16>
    %44 = vector.shape_cast %43 : vector<1x4x4xbf16> to vector<4x4xbf16>
    %cst_36 = arith.constant dense<0.000000e+00> : vector<4x256xf32>
    %45 = tpu.matmul %44, %42, %cst_36 {dimension_numbers = #tpu.dot_dimension_numbers<[1], [0], [0], [1], [0, 0, 1, 1], [], []>} : vector<4x4xbf16>, vector<4x256xbf16>, vector<4x256xf32> -> vector<4x256xf32>
    %46 = arith.addf %40, %45 : vector<4x256xf32>
    %c0_37 = arith.constant 0 : index
    %c143 = arith.constant 143 : index
    %47 = vector.load %arg7[%c0_37, %c143] : memref<4x512xbf16, #tpu.memory_space<vmem>>, vector<4x256xbf16>
    %48 = arith.mulf %47, %8 : vector<4x256xbf16>
    %c6 = arith.constant 6 : index
    %c0_38 = arith.constant 0 : index
    %c0_39 = arith.constant 0 : index
    %49 = vector.load %arg4[%c6, %c0_38, %c0_39] : memref<9x4x4xbf16, #tpu.memory_space<vmem>>, vector<1x4x4xbf16>
    %50 = vector.shape_cast %49 : vector<1x4x4xbf16> to vector<4x4xbf16>
    %cst_40 = arith.constant dense<0.000000e+00> : vector<4x256xf32>
    %51 = tpu.matmul %50, %48, %cst_40 {dimension_numbers = #tpu.dot_dimension_numbers<[1], [0], [0], [1], [0, 0, 1, 1], [], []>} : vector<4x4xbf16>, vector<4x256xbf16>, vector<4x256xf32> -> vector<4x256xf32>
    %52 = arith.addf %46, %51 : vector<4x256xf32>
    %c0_41 = arith.constant 0 : index
    %c144 = arith.constant 144 : index
    %53 = vector.load %arg7[%c0_41, %c144] : memref<4x512xbf16, #tpu.memory_space<vmem>>, vector<4x256xbf16>
    %c7 = arith.constant 7 : index
    %c0_42 = arith.constant 0 : index
    %c0_43 = arith.constant 0 : index
    %54 = vector.load %arg4[%c7, %c0_42, %c0_43] : memref<9x4x4xbf16, #tpu.memory_space<vmem>>, vector<1x4x4xbf16>
    %55 = vector.shape_cast %54 : vector<1x4x4xbf16> to vector<4x4xbf16>
    %cst_44 = arith.constant dense<0.000000e+00> : vector<4x256xf32>
    %56 = tpu.matmul %55, %53, %cst_44 {dimension_numbers = #tpu.dot_dimension_numbers<[1], [0], [0], [1], [0, 0, 1, 1], [], []>} : vector<4x4xbf16>, vector<4x256xbf16>, vector<4x256xf32> -> vector<4x256xf32>
    %57 = arith.addf %52, %56 : vector<4x256xf32>
    %c0_45 = arith.constant 0 : index
    %c145 = arith.constant 145 : index
    %58 = vector.load %arg7[%c0_45, %c145] : memref<4x512xbf16, #tpu.memory_space<vmem>>, vector<4x256xbf16>
    %59 = arith.mulf %58, %11 : vector<4x256xbf16>
    %c8 = arith.constant 8 : index
    %c0_46 = arith.constant 0 : index
    %c0_47 = arith.constant 0 : index
    %60 = vector.load %arg4[%c8, %c0_46, %c0_47] : memref<9x4x4xbf16, #tpu.memory_space<vmem>>, vector<1x4x4xbf16>
    %61 = vector.shape_cast %60 : vector<1x4x4xbf16> to vector<4x4xbf16>
    %cst_48 = arith.constant dense<0.000000e+00> : vector<4x256xf32>
    %62 = tpu.matmul %61, %59, %cst_48 {dimension_numbers = #tpu.dot_dimension_numbers<[1], [0], [0], [1], [0, 0, 1, 1], [], []>} : vector<4x4xbf16>, vector<4x256xbf16>, vector<4x256xf32> -> vector<4x256xf32>
    %63 = arith.addf %57, %62 : vector<4x256xf32>
    %c0_49 = arith.constant 0 : index
    %c0_50 = arith.constant 0 : index
    %64 = vector.load %arg5[%c0_49, %c0_50] : memref<4x4xbf16, #tpu.memory_space<vmem>>, vector<4x4xbf16>
    %cst_51 = arith.constant dense<0.000000e+00> : vector<4x256xf32>
    %65 = tpu.matmul %64, %36, %cst_51 {dimension_numbers = #tpu.dot_dimension_numbers<[1], [0], [0], [1], [0, 0, 1, 1], [], []>} : vector<4x4xbf16>, vector<4x256xbf16>, vector<4x256xf32> -> vector<4x256xf32>
    %c0_52 = arith.constant 0 : index
    %c2_53 = arith.constant 2 : index
    %66 = vector.load %arg3[%c0_52, %c2_53] : memref<4x4xf32, #tpu.memory_space<vmem>>, vector<4x1xf32>
    %67 = vector.broadcast %66 : vector<4x1xf32> to vector<4x256xf32>
    %68 = arith.addf %65, %67 : vector<4x256xf32>
    %cst_54 = arith.constant 0.000000e+00 : f32
    %69 = vector.broadcast %cst_54 : f32 to vector<4x256xf32>
    %70 = arith.subf %69, %68 : vector<4x256xf32>
    %71 = math.exp %70 : vector<4x256xf32>
    %cst_55 = arith.constant 1.000000e+00 : f32
    %72 = vector.broadcast %cst_55 : f32 to vector<4x256xf32>
    %73 = arith.addf %72, %71 : vector<4x256xf32>
    %cst_56 = arith.constant 1.000000e+00 : f32
    %74 = vector.broadcast %cst_56 : f32 to vector<4x256xf32>
    %75 = arith.divf %74, %73 : vector<4x256xf32>
    %76 = arith.extf %36 : vector<4x256xbf16> to vector<4x256xf32>
    %c0_57 = arith.constant 0 : index
    %c0_58 = arith.constant 0 : index
    %77 = vector.load %arg3[%c0_57, %c0_58] : memref<4x4xf32, #tpu.memory_space<vmem>>, vector<4x1xf32>
    %78 = vector.broadcast %77 : vector<4x1xf32> to vector<4x256xf32>
    %79 = arith.mulf %76, %78 : vector<4x256xf32>
    %c0_59 = arith.constant 0 : index
    %c1_60 = arith.constant 1 : index
    %80 = vector.load %arg3[%c0_59, %c1_60] : memref<4x4xf32, #tpu.memory_space<vmem>>, vector<4x1xf32>
    %81 = vector.broadcast %80 : vector<4x1xf32> to vector<4x256xf32>
    %82 = arith.addf %79, %81 : vector<4x256xf32>
    %83 = arith.mulf %82, %75 : vector<4x256xf32>
    %84 = arith.addf %83, %63 : vector<4x256xf32>
    %c0_61 = arith.constant 0 : index
    %c3_62 = arith.constant 3 : index
    %85 = vector.load %arg3[%c0_61, %c3_62] : memref<4x4xf32, #tpu.memory_space<vmem>>, vector<4x1xf32>
    %86 = vector.broadcast %85 : vector<4x1xf32> to vector<4x256xf32>
    %87 = arith.addf %84, %86 : vector<4x256xf32>
    %cst_63 = arith.constant 0.000000e+00 : f32
    %88 = vector.broadcast %cst_63 : f32 to vector<4x256xf32>
    %89 = arith.subf %88, %87 : vector<4x256xf32>
    %90 = math.exp %89 : vector<4x256xf32>
    %cst_64 = arith.constant 1.000000e+00 : f32
    %91 = vector.broadcast %cst_64 : f32 to vector<4x256xf32>
    %92 = arith.addf %91, %90 : vector<4x256xf32>
    %93 = arith.divf %87, %92 : vector<4x256xf32>
    %94 = arith.truncf %93 : vector<4x256xf32> to vector<4x256xbf16>
    %c0_65 = arith.constant 0 : index
    %c0_66 = arith.constant 0 : index
    %c0_67 = arith.constant 0 : index
    %95 = vector.load %arg6[%c0_65, %c0_66, %c0_67] : memref<1x4x256xbf16, #tpu.memory_space<vmem>>, vector<1x4x256xbf16>
    %96 = vector.shape_cast %95 : vector<1x4x256xbf16> to vector<4x256xbf16>
    %97 = vector.shape_cast %94 : vector<4x256xbf16> to vector<1x4x256xbf16>
    tpu.vector_store %arg6[%c0_65, %c0_66, %c0_67], %97 {strides = array<i32>} : memref<1x4x256xbf16, #tpu.memory_space<vmem>>, vector<1x4x256xbf16>,
    return
  }
  func.func @transform_0(%arg0: i32) -> (i32, i32, i32) {
    %c0_i32 = arith.constant 0 : i32
    %c0_i32_0 = arith.constant 0 : i32
    %c0_i32_1 = arith.constant 0 : i32
    return %arg0, %c0_i32, %c0_i32_0 : i32, i32, i32
  }
  func.func @transform_1(%arg0: i32) -> (i32, i32) {
    %c0_i32 = arith.constant 0 : i32
    %c0_i32_0 = arith.constant 0 : i32
    %c0_i32_1 = arith.constant 0 : i32
    return %c0_i32, %c0_i32_0 : i32, i32
  }
  func.func @transform_2(%arg0: i32) -> (i32, i32) {
    %c0_i32 = arith.constant 0 : i32
    %c0_i32_0 = arith.constant 0 : i32
    %c0_i32_1 = arith.constant 0 : i32
    return %c0_i32, %c0_i32_0 : i32, i32
  }
  func.func @transform_3(%arg0: i32) -> (i32, i32, i32) {
    %c0_i32 = arith.constant 0 : i32
    %c0_i32_0 = arith.constant 0 : i32
    %c0_i32_1 = arith.constant 0 : i32
    %c0_i32_2 = arith.constant 0 : i32
    return %c0_i32, %c0_i32_0, %c0_i32_1 : i32, i32, i32
  }
  func.func @transform_4(%arg0: i32) -> (i32, i32) {
    %c0_i32 = arith.constant 0 : i32
    %c0_i32_0 = arith.constant 0 : i32
    %c0_i32_1 = arith.constant 0 : i32
    return %c0_i32, %c0_i32_0 : i32, i32
  }
  func.func @transform_5(%arg0: i32) -> (i32, i32, i32) {
    %c0_i32 = arith.constant 0 : i32
    %c0_i32_0 = arith.constant 0 : i32
    %c0_i32_1 = arith.constant 0 : i32
    return %arg0, %c0_i32, %c0_i32_0 : i32, i32, i32
  }
}

</mosaic_0001>

<llo_original>
// kernel: tpu_custom_call.1
$region0: #{tpu_custom_call.1}
  #allocation0 [shape = 'u32[]', space=smem, size = 0x4, offset = 0x4, fixed_abs, tag = 'smem constant byte address 0x4 - core index']
  #allocation1 [shape = 'u32[72,128]{1,0:T(1,128)}', space=vmem, size = 0x9000, scoped, tag = 'internal scratch']
  #allocation2 [shape = 'bf16[4,512]{1,0:T(4,128)(2,1)}', space=vmem, size = 0x1000, scoped, tag = 'scratch operand']
  %s0 = inlined_call_operand.vmem [shape: bf16[2,4,256], index: 0, kind: input, shape index: {}]
  %s1 = inlined_call_operand.vmem [shape: bf16[2,256], index: 1, kind: input, shape index: {}]
  %s2 = inlined_call_operand.vmem [shape: f32[4,4], index: 2, kind: input, shape index: {}]
  %s3 = inlined_call_operand.vmem [shape: bf16[9,4,4], index: 3, kind: input, shape index: {}]
  %s4 = inlined_call_operand.vmem [shape: bf16[4,4], index: 4, kind: input, shape index: {}]
  %s5 = inlined_call_operand.hbm [shape: bf16[2,4,256], index: 5, kind: output, shape index: {}]
  %s6 = sld [smem:[#allocation0]]
  $region53: #{tpu_custom_call.1} parent=0
    _
  %s8 = ssub.s32 1, %s6
  %s9 = scalar_select 0, %s8, %s6
  $region1: #{tpu_custom_call.1} parent=0
    #allocation3 [shape = 'u8[4096]{0}', space=vmem, size = 0x1000, scoped, tag = 'output window, operand 0']
    #allocation4 [shape = 's32[2]{0}', space=sflag, size = 0x8, scoped, tag = 'scoped memory for tpu_custom_call.1']
    %10 = vsyncpa [#allocation4], 0
    %s11 = scalar_lea.sflag [#allocation4], 1
    %12 = vsyncpa %s11, 0
    loop: start=0, step=1, limit=4
    $region2: #{tpu_custom_call.1} parent=1 // loop_pre_header
      _
    $region3: #{tpu_custom_call.1} parent=1 // loop_header
      %s14 = sphi 0, %s18
      %p15 = scmp.ge.s32.totalorder %s14, 4
      %s24 = sphi 0, %s26
      %s27 = sphi 0, %s24
      %s28 = sphi 0, %s27
      %s44 = sphi 0, %s28
      %s48 = sphi 0, %s48
      %s50 = sphi 0, %s48
      %s51 = sphi 0, %s50
      %s65 = sphi 0, %s51
      %s69 = sphi 0, %s69
      %s71 = sphi 0, %s69
      %s72 = sphi 0, %s71
      %s86 = sphi 0, %s72
      %s90 = sphi 0, %s90
      %s92 = sphi 0, %s90
      %s93 = sphi 0, %s92
      %s107 = sphi 0, %s93
      %s111 = sphi 0, %s111
      %s113 = sphi 0, %s111
      %s114 = sphi 0, %s113
      %s128 = sphi 0, %s114
      %s134 = sphi 0, %s136
      %s137 = sphi 0, %s134
      %s138 = sphi 0, %s137
      %s154 = sphi 0, %s138
    $region4: #{tpu_custom_call.1} parent=1 // loop_header_branch
      %17 = sbr.rel (%p15) target = $region8
    $region5: #{tpu_custom_call.1} parent=1 // loop_body
      %s19 = ssub.s32 %s14, 1
      %s20 = ssub.s32 %s14, 2
      %s21 = sadd.s32 %s14, 1
      %s22 = ssub.s32 %s14, %s21
      %p23 = scmp.eq.s32.totalorder %s22, 0
      %s25 = sadd.s32 %s24, 1
      %s26 = scalar_select %p23, %s24, %s25
      %p29 = pneg %p23
      %p30 = scmp.eq.s32.totalorder %s14, 1
      %p31 = por %p29, %p30
      %p32 = scmp.ne.s32.totalorder %s24, %s27
      %p33 = scmp.eq.s32.totalorder %s14, 0
      %p34 = por %p32, %p33
      %p35 = scmp.ne.s32.totalorder %s24, %s27
      %p36 = scmp.eq.s32.totalorder %s19, 1
      %p37 = por %p35, %p36
      %p38 = scmp.ne.s32.totalorder %s27, %s28
      %p39 = scmp.eq.s32.totalorder %s19, 0
      %p40 = por %p38, %p39
      %p41 = scmp.ne.s32.totalorder %s27, %s28
      %p42 = scmp.eq.s32.totalorder %s20, 1
      %p43 = por %p41, %p42
      %p45 = scmp.ne.s32.totalorder %s28, %s44
      %p46 = scmp.eq.s32.totalorder %s20, 0
      %p47 = por %p45, %p46
      %s49 = sadd.s32 %s48, 1
      %p52 = scmp.eq.s32.totalorder %s14, 1
      %p53 = scmp.ne.s32.totalorder %s48, %s50
      %p54 = scmp.eq.s32.totalorder %s14, 0
      %p55 = por %p53, %p54
      %p56 = scmp.ne.s32.totalorder %s48, %s50
      %p57 = scmp.eq.s32.totalorder %s19, 1
      %p58 = por %p56, %p57
      %p59 = scmp.ne.s32.totalorder %s50, %s51
      %p60 = scmp.eq.s32.totalorder %s19, 0
      %p61 = por %p59, %p60
      %p62 = scmp.ne.s32.totalorder %s50, %s51
      %p63 = scmp.eq.s32.totalorder %s20, 1
      %p64 = por %p62, %p63
      %p66 = scmp.ne.s32.totalorder %s51, %s65
      %p67 = scmp.eq.s32.totalorder %s20, 0
      %p68 = por %p66, %p67
      %s70 = sadd.s32 %s69, 1
      %p73 = scmp.eq.s32.totalorder %s14, 1
      %p74 = scmp.ne.s32.totalorder %s69, %s71
      %p75 = scmp.eq.s32.totalorder %s14, 0
      %p76 = por %p74, %p75
      %p77 = scmp.ne.s32.totalorder %s69, %s71
      %p78 = scmp.eq.s32.totalorder %s19, 1
      %p79 = por %p77, %p78
      %p80 = scmp.ne.s32.totalorder %s71, %s72
      %p81 = scmp.eq.s32.totalorder %s19, 0
      %p82 = por %p80, %p81
      %p83 = scmp.ne.s32.totalorder %s71, %s72
      %p84 = scmp.eq.s32.totalorder %s20, 1
      %p85 = por %p83, %p84
      %p87 = scmp.ne.s32.totalorder %s72, %s86
      %p88 = scmp.eq.s32.totalorder %s20, 0
      %p89 = por %p87, %p88
      %s91 = sadd.s32 %s90, 1
      %p94 = scmp.eq.s32.totalorder %s14, 1
      %p95 = scmp.ne.s32.totalorder %s90, %s92
      %p96 = scmp.eq.s32.totalorder %s14, 0
      %p97 = por %p95, %p96
      %p98 = scmp.ne.s32.totalorder %s90, %s92
      %p99 = scmp.eq.s32.totalorder %s19, 1
      %p100 = por %p98, %p99
      %p101 = scmp.ne.s32.totalorder %s92, %s93
      %p102 = scmp.eq.s32.totalorder %s19, 0
      %p103 = por %p101, %p102
      %p104 = scmp.ne.s32.totalorder %s92, %s93
      %p105 = scmp.eq.s32.totalorder %s20, 1
      %p106 = por %p104, %p105
      %p108 = scmp.ne.s32.totalorder %s93, %s107
      %p109 = scmp.eq.s32.totalorder %s20, 0
      %p110 = por %p108, %p109
      %s112 = sadd.s32 %s111, 1
      %p115 = scmp.eq.s32.totalorder %s14, 1
      %p116 = scmp.ne.s32.totalorder %s111, %s113
      %p117 = scmp.eq.s32.totalorder %s14, 0
      %p118 = por %p116, %p117
      %p119 = scmp.ne.s32.totalorder %s111, %s113
      %p120 = scmp.eq.s32.totalorder %s19, 1
      %p121 = por %p119, %p120
      %p122 = scmp.ne.s32.totalorder %s113, %s114
      %p123 = scmp.eq.s32.totalorder %s19, 0
      %p124 = por %p122, %p123
      %p125 = scmp.ne.s32.totalorder %s113, %s114
      %p126 = scmp.eq.s32.totalorder %s20, 1
      %p127 = por %p125, %p126
      %p129 = scmp.ne.s32.totalorder %s114, %s128
      %p130 = scmp.eq.s32.totalorder %s20, 0
      %p131 = por %p129, %p130
      %s132 = ssub.s32 %s14, %s21
      %p133 = scmp.eq.s32.totalorder %s132, 0
      %s135 = sadd.s32 %s134, 1
      %s136 = scalar_select %p133, %s134, %s135
      %p139 = pneg %p133
      %p140 = scmp.eq.s32.totalorder %s14, 1
      %p141 = por %p139, %p140
      %p142 = scmp.ne.s32.totalorder %s134, %s137
      %p143 = scmp.eq.s32.totalorder %s14, 0
      %p144 = por %p142, %p143
      %p145 = scmp.ne.s32.totalorder %s134, %s137
      %p146 = scmp.eq.s32.totalorder %s19, 1
      %p147 = por %p145, %p146
      %p148 = scmp.ne.s32.totalorder %s137, %s138
      %p149 = scmp.eq.s32.totalorder %s19, 0
      %p150 = por %p148, %p149
      %p151 = scmp.ne.s32.totalorder %s137, %s138
      %p152 = scmp.eq.s32.totalorder %s20, 1
      %p153 = por %p151, %p152
      %p155 = scmp.ne.s32.totalorder %s138, %s154
      %p156 = scmp.eq.s32.totalorder %s20, 0
      %p157 = por %p155, %p156
      %p158 = scmp.le.s32.totalorder 1, %s14
      %p159 = scmp.lt.s32.totalorder %s14, 3
      %p160 = pnand %p158, %p159
      %p161 = pneg %p160
      // Predicated region
      $region9: #{tpu_custom_call.1} parent=5 // pred_check
        _
      $region10: #{tpu_custom_call.1} parent=5 // pred_check_branch
        %163 = sbr.rel (%p160) target = $region12
      $region11: #{tpu_custom_call.1} parent=5 // pred_region
        %s164 = ssub.s32 %s14, 1
        // Predicated region
        $region13: #{tpu_custom_call.1} parent=11 // pred_check
          %p165 = pneg %p61
        $region14: #{tpu_custom_call.1} parent=11 // pred_check_branch
          %167 = sbr.rel (%p165) target = $region16
        $region15: #{tpu_custom_call.1} parent=11 // pred_region
          _
        $region16: #{tpu_custom_call.1} parent=11 // pred_fallthru
          _
        // Predicated region
        $region17: #{tpu_custom_call.1} parent=11 // pred_check
          %p168 = pneg %p82
        $region18: #{tpu_custom_call.1} parent=11 // pred_check_branch
          %170 = sbr.rel (%p168) target = $region20
        $region19: #{tpu_custom_call.1} parent=11 // pred_region
          _
        $region20: #{tpu_custom_call.1} parent=11 // pred_fallthru
          _
        // Predicated region
        $region21: #{tpu_custom_call.1} parent=11 // pred_check
          %p171 = pneg %p103
        $region22: #{tpu_custom_call.1} parent=11 // pred_check_branch
          %173 = sbr.rel (%p171) target = $region24
        $region23: #{tpu_custom_call.1} parent=11 // pred_region
          _
        $region24: #{tpu_custom_call.1} parent=11 // pred_fallthru
          _
        // Predicated region
        $region25: #{tpu_custom_call.1} parent=11 // pred_check
          %p174 = pneg %p124
        $region26: #{tpu_custom_call.1} parent=11 // pred_check_branch
          %176 = sbr.rel (%p174) target = $region28
        $region27: #{tpu_custom_call.1} parent=11 // pred_region
          _
        $region28: #{tpu_custom_call.1} parent=11 // pred_fallthru
          _
      $region12: #{tpu_custom_call.1} parent=5 // pred_fallthru
        _
      %p177 = scmp.lt.s32.totalorder %s14, 2
      // Predicated region
      $region29: #{tpu_custom_call.1} parent=5 // pred_check
        %p178 = pneg %p177
      $region30: #{tpu_custom_call.1} parent=5 // pred_check_branch
        %180 = sbr.rel (%p178) target = $region32
      $region31: #{tpu_custom_call.1} parent=5 // pred_region
        // Predicated region
        $region33: #{tpu_custom_call.1} parent=31 // pred_check
          %p181 = pneg %p34
        $region34: #{tpu_custom_call.1} parent=31 // pred_check_branch
          %183 = sbr.rel (%p181) target = $region36
        $region35: #{tpu_custom_call.1} parent=31 // pred_region
          %p184 = scmp.lt.s32.totalorder %s14, 1
          %s185 = scalar_select %p184, %s14, 1
          %s186 = smul.addr %s185, 2
          %s187 = smul.addr %s186, 2
          %s188 = scalar_lea.vmem %s0, %s187
        $region36: #{tpu_custom_call.1} parent=31 // pred_fallthru
          _
      $region32: #{tpu_custom_call.1} parent=5 // pred_fallthru
        _
      %p189 = scmp.le.s32.totalorder 1, %s14
      %p190 = scmp.lt.s32.totalorder %s14, 3
      %p191 = pnand %p189, %p190
      %p192 = pneg %p191
      // Predicated region
      $region37: #{tpu_custom_call.1} parent=5 // pred_check
        _
      $region38: #{tpu_custom_call.1} parent=5 // pred_check_branch
        %194 = sbr.rel (%p191) target = $region40
      $region39: #{tpu_custom_call.1} parent=5 // pred_region
        %s195 = ssub.s32 %s14, 1
        %p196 = scmp.lt.s32.totalorder %s19, 1
        %s197 = scalar_select %p196, %s19, 1
        %s198 = smul.addr %s197, 2
        %s199 = smul.addr %s198, 2
        %s200 = scalar_lea.vmem %s0, %s199
        %p201 = pneg %p40
        %p202 = pneg %p37
        %p203 = pneg %p61
        %p204 = pneg %p58
        %p205 = pneg %p82
        %p206 = pneg %p79
        %p207 = pneg %p103
        %p208 = pneg %p100
        %p209 = pneg %p124
        %p210 = pneg %p121
        %p211 = pneg %p150
        %p212 = pneg %p147
        %s213 = sand.u32 %s137, 1
        %s214 = scalar_lea.sflag [#allocation4], %s213
        %s215 = sand.u32 %s137, 1
        %s216 = smul.addr %s215, 4
        %s217 = scalar_lea.vmem [#allocation3], %s216
        %p218 = scmp.lt.s32.totalorder %s19, 1
        %s219 = scalar_select %p218, %s19, 1
        %s220 = smul.addr %s219, 2
        %s221 = smul.addr %s220, 2
        %s222 = scalar_lea.vmem %s0, %s221
        %vm224 = vcmask 1042296
        %225 = vst.msk [vmem:[#allocation2] sm:$0x3] %vm224, 0
        %vm226 = vcmask 132096
        %227 = vst.msk [vmem:[#allocation2 + $0x6] sm:$0x3] %vm226, 0
        %v228 = vld [vmem:[%s222] sm:$0xf]
        %229 = vst [vmem:[#allocation2 + $0x2] sm:$0xf] %v228
        %v230 = vld [vmem:[%s1] sm:$0x3]
        %232 = vst [vmem:[#allocation1] ss:$9 sm:$0xff] %v230
        %v233 = vld [vmem:[#allocation1] sm:$0xff]
        %v234 = vld [vmem:[#allocation1 + $0x9] sm:$0xff]
        %v235 = vpack.i.b16 %v233, %v233
        %v237 = vperm.slane %v235, 0
        %v238 = vpack.i.b16 %v234, %v234
        %v240 = vperm.slane %v238, 0
        %v241 = vld [vmem:[%s1] sm:$0x3]
        %243 = vst [vmem:[#allocation1] ss:$9 sm:$0xff] %v241
        %v244 = vld [vmem:[#allocation1] sm:$0xff]
        %v245 = vld [vmem:[#allocation1 + $0x9] sm:$0xff]
        %v246 = vshrl.u32 %v244, 16
        %v247 = vpack.i.b16 %v246, %v246
        %v249 = vperm.slane %v247, 0
        %v250 = vshrl.u32 %v245, 16
        %v251 = vpack.i.b16 %v250, %v250
        %v253 = vperm.slane %v251, 0
        %v254 = vld [vmem:[#allocation2] sm:$0x3f]
        %v255 = vunpack.c.l.bf16 %v254
        %v256 = vunpack.c.h.bf16 %v254
        %v257 = vunpack.c.l.bf16 %v237
        %v258 = vunpack.c.l.bf16 %v240
        %v261 = vrot.slane %v258, 4
        %vm262 = vcmask 1043456
        %v263 = vsel %vm262, %v257, %v261
        %264 = vrot.lane.b32.xlu0 %v263, 111
        %v265 = vpop.permute.xlu0 %264
        %v266 = vrot.slane %v265, 4
        %vm267 = vcmask 908288
        %v268 = vsel %vm267, %v266, %v265
        %v271 = vmul.f32 %v255, %v268
        %v272 = vmul.f32 %v256, %v266
        %275 = vst [vmem:[#allocation1] ss:$2 sm:$0xff] %v271
        %s276 = scalar_lea.vmem [#allocation1], 16
        %277 = vst [vmem:[%s276] ss:$2 sm:$0xff] %v272
        %v278 = vld.sshfl [vmem:[#allocation1] sm:$0xff pattern:$0x75316420]
        %v279 = vld.sshfl [vmem:[#allocation1 + $0x8] sm:$0xff pattern:$0x75316420]
        %v280 = vld.sshfl [vmem:[#allocation1 + $0x10] sm:$0xff pattern:$0x75316420]
        %v284 = vpack.c.bf16 %v278, %v278
        %v285 = vpack.c.bf16 %v279, %v279
        %v286 = vpack.c.bf16 %v280, %v280
        %v287 = vld [vmem:[%s3] sm:$0x3]
        %v288 = vld [vmem:[#allocation2] sm:$0x3f]
        %s289 = scalar_lea.vmem %s3, 2
        %v290 = vld [vmem:[%s289] sm:$0x3]
        %292 = vst [vmem:[#allocation1] ss:$4 sm:$0xff] %v288
        %v293 = vld.sshfl [vmem:[#allocation1] sm:$0xff pattern:$0x73625140]
        %v295 = vld.sshfl [vmem:[#allocation1 + $0x8] sm:$0xff pattern:$0x73625140]
        %v297 = vld.sshfl [vmem:[#allocation1 + $0x10] sm:$0xff pattern:$0x73625140]
        %299 = vrot.lane.b32.xlu0 %v293, 16
        %v300 = vpop.permute.xlu0 %299
        %301 = vrot.lane.b32.xlu0 %v295, 16
        %v302 = vpop.permute.xlu0 %301
        %303 = vrot.lane.b32.xlu0 %v297, 16
        %v304 = vpop.permute.xlu0 %303
        %vm305 = vcmask 130048
        %v306 = vsel %vm305, %v300, %v302
        %v307 = vsel %vm305, %v302, %v304
        %vm308 = vcmask 31744
        %v310 = vsel %vm308, %v290, 0
        %vm312 = vcmask 1041408
        %v314 = vsel %vm312, %v306, 0
        %v317 = vsel %vm312, %v307, 0
        %319 = vmatpush.bf16.msra.mxu0 0
        %320 = vmatpush.bf16.msra.mxu0 0
        %321 = vmatpush.bf16.msra.mxu0 0
        %322 = vmatpush.bf16.msra.mxu0 0
        %323 = vmatpush.bf16.msra.mxu0 0
        %324 = vmatpush.bf16.msra.mxu0 0
        %325 = vmatpush.bf16.msra.mxu0 0
        %326 = vmatpush.bf16.msra.mxu0 %v314
        %327 = vmatmul.bf16.gmra.mxu0 %v310
        %v328 = vpop.f32.mrf.mxu0
        %v329 = vadd.f32 0.0, %v328
        %v330 = vpop.f32.mrf.mxu0
        %331 = vdwg.mxu0
        %332 = vmatpush.bf16.msra.mxu0 0
        %333 = vmatpush.bf16.msra.mxu0 0
        %334 = vmatpush.bf16.msra.mxu0 0
        %335 = vmatpush.bf16.msra.mxu0 0
        %336 = vmatpush.bf16.msra.mxu0 0
        %337 = vmatpush.bf16.msra.mxu0 0
        %338 = vmatpush.bf16.msra.mxu0 0
        %339 = vmatpush.bf16.msra.mxu0 %v317
        %340 = vmatmul.bf16.gmra.mxu0 %v310
        %v341 = vpop.f32.mrf.mxu0
        %v342 = vadd.f32 0.0, %v341
        %v343 = vpop.f32.mrf.mxu0
        %344 = vdwg.mxu0
        %348 = vrot.lane.b32.xlu0 %v284, 17
        %v349 = vpop.permute.xlu0 %348
        %350 = vrot.lane.b32.xlu0 %v285, 17
        %v351 = vpop.permute.xlu0 %350
        %352 = vrot.lane.b32.xlu0 %v286, 17
        %v353 = vpop.permute.xlu0 %352
        %vm354 = vcmask 138240
        %v355 = vsel %vm354, %v349, %v351
        %v356 = vsel %vm354, %v351, %v353
        %v358 = vsel %vm308, %v287, 0
        %v361 = vsel %vm312, %v355, 0
        %v364 = vsel %vm312, %v356, 0
        %366 = vmatpush.bf16.msra.mxu0 0
        %367 = vmatpush.bf16.msra.mxu0 0
        %368 = vmatpush.bf16.msra.mxu0 0
        %369 = vmatpush.bf16.msra.mxu0 0
        %370 = vmatpush.bf16.msra.mxu0 0
        %371 = vmatpush.bf16.msra.mxu0 0
        %372 = vmatpush.bf16.msra.mxu0 0
        %373 = vmatpush.bf16.msra.mxu0 %v361
        %374 = vmatmul.bf16.gmra.mxu0 %v358
        %v375 = vpop.f32.mrf.mxu0
        %v376 = vadd.f32 %v329, %v375
        %v377 = vpop.f32.mrf.mxu0
        %378 = vdwg.mxu0
        %379 = vmatpush.bf16.msra.mxu0 0
        %380 = vmatpush.bf16.msra.mxu0 0
        %381 = vmatpush.bf16.msra.mxu0 0
        %382 = vmatpush.bf16.msra.mxu0 0
        %383 = vmatpush.bf16.msra.mxu0 0
        %384 = vmatpush.bf16.msra.mxu0 0
        %385 = vmatpush.bf16.msra.mxu0 0
        %386 = vmatpush.bf16.msra.mxu0 %v364
        %387 = vmatmul.bf16.gmra.mxu0 %v358
        %v388 = vpop.f32.mrf.mxu0
        %v389 = vadd.f32 %v342, %v388
        %v390 = vpop.f32.mrf.mxu0
        %391 = vdwg.mxu0
        %v392 = vld [vmem:[#allocation2] sm:$0x3f]
        %v393 = vunpack.c.l.bf16 %v392
        %v394 = vunpack.c.h.bf16 %v392
        %v395 = vunpack.c.l.bf16 %v249
        %v396 = vunpack.c.l.bf16 %v253
        %v399 = vrot.slane %v396, 4
        %v400 = vsel %vm262, %v395, %v399
        %401 = vrot.lane.b32.xlu0 %v400, 113
        %v402 = vpop.permute.xlu0 %401
        %v403 = vrot.slane %v402, 4
        %vm404 = vcmask 924672
        %v405 = vsel %vm404, %v403, %v402
        %v408 = vmul.f32 %v393, %v405
        %v409 = vmul.f32 %v394, %v403
        %412 = vst [vmem:[#allocation1] ss:$2 sm:$0xff] %v408
        %s413 = scalar_lea.vmem [#allocation1], 16
        %414 = vst [vmem:[%s413] ss:$2 sm:$0xff] %v409
        %v415 = vld.sshfl [vmem:[#allocation1] sm:$0xff pattern:$0x75316420]
        %v416 = vld.sshfl [vmem:[#allocation1 + $0x8] sm:$0xff pattern:$0x75316420]
        %v417 = vld.sshfl [vmem:[#allocation1 + $0x10] sm:$0xff pattern:$0x75316420]
        %v421 = vpack.c.bf16 %v415, %v415
        %v422 = vpack.c.bf16 %v416, %v416
        %v423 = vpack.c.bf16 %v417, %v417
        %s424 = scalar_lea.vmem %s3, 4
        %v425 = vld [vmem:[%s424] sm:$0x3]
        %429 = vrot.lane.b32.xlu0 %v421, 15
        %v430 = vpop.permute.xlu0 %429
        %431 = vrot.lane.b32.xlu0 %v422, 15
        %v432 = vpop.permute.xlu0 %431
        %433 = vrot.lane.b32.xlu0 %v423, 15
        %v434 = vpop.permute.xlu0 %433
        %vm435 = vcmask 121856
        %v436 = vsel %vm435, %v430, %v432
        %v437 = vsel %vm435, %v432, %v434
        %v439 = vsel %vm308, %v425, 0
        %v442 = vsel %vm312, %v436, 0
        %v445 = vsel %vm312, %v437, 0
        %447 = vmatpush.bf16.msra.mxu0 0
        %448 = vmatpush.bf16.msra.mxu0 0
        %449 = vmatpush.bf16.msra.mxu0 0
        %450 = vmatpush.bf16.msra.mxu0 0
        %451 = vmatpush.bf16.msra.mxu0 0
        %452 = vmatpush.bf16.msra.mxu0 0
        %453 = vmatpush.bf16.msra.mxu0 0
        %454 = vmatpush.bf16.msra.mxu0 %v442
        %455 = vmatmul.bf16.gmra.mxu0 %v439
        %v456 = vpop.f32.mrf.mxu0
        %v457 = vadd.f32 0.0, %v456
        %v458 = vpop.f32.mrf.mxu0
        %459 = vdwg.mxu0
        %460 = vmatpush.bf16.msra.mxu0 0
        %461 = vmatpush.bf16.msra.mxu0 0
        %462 = vmatpush.bf16.msra.mxu0 0
        %463 = vmatpush.bf16.msra.mxu0 0
        %464 = vmatpush.bf16.msra.mxu0 0
        %465 = vmatpush.bf16.msra.mxu0 0
        %466 = vmatpush.bf16.msra.mxu0 0
        %467 = vmatpush.bf16.msra.mxu0 %v445
        %468 = vmatmul.bf16.gmra.mxu0 %v439
        %v469 = vpop.f32.mrf.mxu0
        %v470 = vadd.f32 0.0, %v469
        %v471 = vpop.f32.mrf.mxu0
        %472 = vdwg.mxu0
        %v473 = vadd.f32 %v376, %v457
        %v474 = vadd.f32 %v389, %v470
        %v475 = vld [vmem:[#allocation2] sm:$0x3f]
        %v476 = vunpack.c.l.bf16 %v475
        %v477 = vunpack.c.h.bf16 %v475
        %478 = vrot.lane.b32.xlu0 %v263, 127
        %v479 = vpop.permute.xlu0 %478
        %v480 = vrot.slane %v479, 4
        %vm481 = vcmask 1039360
        %v482 = vsel %vm481, %v480, %v479
        %v485 = vmul.f32 %v476, %v482
        %v486 = vmul.f32 %v477, %v480
        %489 = vst [vmem:[#allocation1] ss:$2 sm:$0xff] %v485
        %s490 = scalar_lea.vmem [#allocation1], 16
        %491 = vst [vmem:[%s490] ss:$2 sm:$0xff] %v486
        %v492 = vld.sshfl [vmem:[#allocation1] sm:$0xff pattern:$0x75316420]
        %v493 = vld.sshfl [vmem:[#allocation1 + $0x8] sm:$0xff pattern:$0x75316420]
        %v494 = vld.sshfl [vmem:[#allocation1 + $0x10] sm:$0xff pattern:$0x75316420]
        %v498 = vpack.c.bf16 %v492, %v492
        %v499 = vpack.c.bf16 %v493, %v493
        %v500 = vpack.c.bf16 %v494, %v494
        %s501 = scalar_lea.vmem %s3, 6
        %v502 = vld [vmem:[%s501] sm:$0x3]
        %506 = vrot.lane.b32.xlu0 %v498, 1
        %v507 = vpop.permute.xlu0 %506
        %508 = vrot.lane.b32.xlu0 %v499, 1
        %v509 = vpop.permute.xlu0 %508
        %510 = vrot.lane.b32.xlu0 %v500, 1
        %v511 = vpop.permute.xlu0 %510
        %vm512 = vcmask 7168
        %v513 = vsel %vm512, %v507, %v509
        %v514 = vsel %vm512, %v509, %v511
        %v516 = vsel %vm308, %v502, 0
        %v519 = vsel %vm312, %v513, 0
        %v522 = vsel %vm312, %v514, 0
        %524 = vmatpush.bf16.msra.mxu0 0
        %525 = vmatpush.bf16.msra.mxu0 0
        %526 = vmatpush.bf16.msra.mxu0 0
        %527 = vmatpush.bf16.msra.mxu0 0
        %528 = vmatpush.bf16.msra.mxu0 0
        %529 = vmatpush.bf16.msra.mxu0 0
        %530 = vmatpush.bf16.msra.mxu0 0
        %531 = vmatpush.bf16.msra.mxu0 %v519
        %532 = vmatmul.bf16.gmra.mxu0 %v516
        %v533 = vpop.f32.mrf.mxu0
        %v534 = vadd.f32 0.0, %v533
        %v535 = vpop.f32.mrf.mxu0
        %536 = vdwg.mxu0
        %537 = vmatpush.bf16.msra.mxu0 0
        %538 = vmatpush.bf16.msra.mxu0 0
        %539 = vmatpush.bf16.msra.mxu0 0
        %540 = vmatpush.bf16.msra.mxu0 0
        %541 = vmatpush.bf16.msra.mxu0 0
        %542 = vmatpush.bf16.msra.mxu0 0
        %543 = vmatpush.bf16.msra.mxu0 0
        %544 = vmatpush.bf16.msra.mxu0 %v522
        %545 = vmatmul.bf16.gmra.mxu0 %v516
        %v546 = vpop.f32.mrf.mxu0
        %v547 = vadd.f32 0.0, %v546
        %v548 = vpop.f32.mrf.mxu0
        %549 = vdwg.mxu0
        %v550 = vadd.f32 %v473, %v534
        %v551 = vadd.f32 %v474, %v547
        %v552 = vld [vmem:[#allocation2 + $0x2] sm:$0xf]
        %s553 = scalar_lea.vmem %s3, 8
        %v554 = vld [vmem:[%s553] sm:$0x3]
        %556 = vst [vmem:[#allocation1] ss:$4 sm:$0xff] %v552
        %v557 = vld.sshfl [vmem:[#allocation1] sm:$0xff pattern:$0x73625140]
        %v558 = vld.sshfl [vmem:[#allocation1 + $0x8] sm:$0xff pattern:$0x73625140]
        %v560 = vsel %vm308, %v554, 0
        %v562 = vsel %vm312, %v557, 0
        %v564 = vsel %vm312, %v558, 0
        %566 = vmatpush.bf16.msra.mxu0 0
        %567 = vmatpush.bf16.msra.mxu0 0
        %568 = vmatpush.bf16.msra.mxu0 0
        %569 = vmatpush.bf16.msra.mxu0 0
        %570 = vmatpush.bf16.msra.mxu0 0
        %571 = vmatpush.bf16.msra.mxu0 0
        %572 = vmatpush.bf16.msra.mxu0 0
        %573 = vmatpush.bf16.msra.mxu0 %v562
        %574 = vmatmul.bf16.gmra.mxu0 %v560
        %v575 = vpop.f32.mrf.mxu0
        %v576 = vadd.f32 0.0, %v575
        %v577 = vpop.f32.mrf.mxu0
        %578 = vdwg.mxu0
        %579 = vmatpush.bf16.msra.mxu0 0
        %580 = vmatpush.bf16.msra.mxu0 0
        %581 = vmatpush.bf16.msra.mxu0 0
        %582 = vmatpush.bf16.msra.mxu0 0
        %583 = vmatpush.bf16.msra.mxu0 0
        %584 = vmatpush.bf16.msra.mxu0 0
        %585 = vmatpush.bf16.msra.mxu0 0
        %586 = vmatpush.bf16.msra.mxu0 %v564
        %587 = vmatmul.bf16.gmra.mxu0 %v560
        %v588 = vpop.f32.mrf.mxu0
        %v589 = vadd.f32 0.0, %v588
        %v590 = vpop.f32.mrf.mxu0
        %591 = vdwg.mxu0
        %v592 = vadd.f32 %v550, %v576
        %v593 = vadd.f32 %v551, %v589
        %v594 = vld [vmem:[#allocation2 + $0x2] sm:$0x3f]
        %v595 = vunpack.c.l.bf16 %v594
        %v596 = vunpack.c.h.bf16 %v594
        %597 = vrot.lane.b32.xlu0 %v400, 1
        %v598 = vpop.permute.xlu0 %597
        %v599 = vrot.slane %v598, 4
        %vm600 = vcmask 7168
        %v601 = vsel %vm600, %v599, %v598
        %v604 = vmul.f32 %v595, %v601
        %v605 = vmul.f32 %v596, %v599
        %608 = vst [vmem:[#allocation1] ss:$2 sm:$0xff] %v604
        %s609 = scalar_lea.vmem [#allocation1], 16
        %610 = vst [vmem:[%s609] ss:$2 sm:$0xff] %v605
        %v611 = vld.sshfl [vmem:[#allocation1] sm:$0xff pattern:$0x75316420]
        %v612 = vld.sshfl [vmem:[#allocation1 + $0x8] sm:$0xff pattern:$0x75316420]
        %v613 = vld.sshfl [vmem:[#allocation1 + $0x10] sm:$0xff pattern:$0x75316420]
        %v617 = vpack.c.bf16 %v611, %v611
        %v618 = vpack.c.bf16 %v612, %v612
        %v619 = vpack.c.bf16 %v613, %v613
        %s620 = scalar_lea.vmem %s3, 10
        %v621 = vld [vmem:[%s620] sm:$0x3]
        %625 = vrot.lane.b32.xlu0 %v617, 127
        %v626 = vpop.permute.xlu0 %625
        %627 = vrot.lane.b32.xlu0 %v618, 127
        %v628 = vpop.permute.xlu0 %627
        %629 = vrot.lane.b32.xlu0 %v619, 127
        %v630 = vpop.permute.xlu0 %629
        %vm631 = vcmask 1039360
        %v632 = vsel %vm631, %v626, %v628
        %v633 = vsel %vm631, %v628, %v630
        %v635 = vsel %vm308, %v621, 0
        %v638 = vsel %vm312, %v632, 0
        %v641 = vsel %vm312, %v633, 0
        %643 = vmatpush.bf16.msra.mxu0 0
        %644 = vmatpush.bf16.msra.mxu0 0
        %645 = vmatpush.bf16.msra.mxu0 0
        %646 = vmatpush.bf16.msra.mxu0 0
        %647 = vmatpush.bf16.msra.mxu0 0
        %648 = vmatpush.bf16.msra.mxu0 0
        %649 = vmatpush.bf16.msra.mxu0 0
        %650 = vmatpush.bf16.msra.mxu0 %v638
        %651 = vmatmul.bf16.gmra.mxu0 %v635
        %v652 = vpop.f32.mrf.mxu0
        %v653 = vadd.f32 0.0, %v652
        %v654 = vpop.f32.mrf.mxu0
        %655 = vdwg.mxu0
        %656 = vmatpush.bf16.msra.mxu0 0
        %657 = vmatpush.bf16.msra.mxu0 0
        %658 = vmatpush.bf16.msra.mxu0 0
        %659 = vmatpush.bf16.msra.mxu0 0
        %660 = vmatpush.bf16.msra.mxu0 0
        %661 = vmatpush.bf16.msra.mxu0 0
        %662 = vmatpush.bf16.msra.mxu0 0
        %663 = vmatpush.bf16.msra.mxu0 %v641
        %664 = vmatmul.bf16.gmra.mxu0 %v635
        %v665 = vpop.f32.mrf.mxu0
        %v666 = vadd.f32 0.0, %v665
        %v667 = vpop.f32.mrf.mxu0
        %668 = vdwg.mxu0
        %v669 = vadd.f32 %v592, %v653
        %v670 = vadd.f32 %v593, %v666
        %v671 = vld [vmem:[#allocation2 + $0x2] sm:$0x3f]
        %v672 = vunpack.c.l.bf16 %v671
        %v673 = vunpack.c.h.bf16 %v671
        %674 = vrot.lane.b32.xlu0 %v263, 15
        %v675 = vpop.permute.xlu0 %674
        %v676 = vrot.slane %v675, 4
        %vm677 = vcmask 121856
        %v678 = vsel %vm677, %v676, %v675
        %v681 = vmul.f32 %v672, %v678
        %v682 = vmul.f32 %v673, %v676
        %685 = vst [vmem:[#allocation1] ss:$2 sm:$0xff] %v681
        %s686 = scalar_lea.vmem [#allocation1], 16
        %687 = vst [vmem:[%s686] ss:$2 sm:$0xff] %v682
        %v688 = vld.sshfl [vmem:[#allocation1] sm:$0xff pattern:$0x75316420]
        %v689 = vld.sshfl [vmem:[#allocation1 + $0x8] sm:$0xff pattern:$0x75316420]
        %v690 = vld.sshfl [vmem:[#allocation1 + $0x10] sm:$0xff pattern:$0x75316420]
        %v694 = vpack.c.bf16 %v688, %v688
        %v695 = vpack.c.bf16 %v689, %v689
        %v696 = vpack.c.bf16 %v690, %v690
        %s697 = scalar_lea.vmem %s3, 12
        %v698 = vld [vmem:[%s697] sm:$0x3]
        %702 = vrot.lane.b32.xlu0 %v694, 113
        %v703 = vpop.permute.xlu0 %702
        %704 = vrot.lane.b32.xlu0 %v695, 113
        %v705 = vpop.permute.xlu0 %704
        %706 = vrot.lane.b32.xlu0 %v696, 113
        %v707 = vpop.permute.xlu0 %706
        %vm708 = vcmask 924672
        %v709 = vsel %vm708, %v703, %v705
        %v710 = vsel %vm708, %v705, %v707
        %v712 = vsel %vm308, %v698, 0
        %v715 = vsel %vm312, %v709, 0
        %v718 = vsel %vm312, %v710, 0
        %720 = vmatpush.bf16.msra.mxu0 0
        %721 = vmatpush.bf16.msra.mxu0 0
        %722 = vmatpush.bf16.msra.mxu0 0
        %723 = vmatpush.bf16.msra.mxu0 0
        %724 = vmatpush.bf16.msra.mxu0 0
        %725 = vmatpush.bf16.msra.mxu0 0
        %726 = vmatpush.bf16.msra.mxu0 0
        %727 = vmatpush.bf16.msra.mxu0 %v715
        %728 = vmatmul.bf16.gmra.mxu0 %v712
        %v729 = vpop.f32.mrf.mxu0
        %v730 = vadd.f32 0.0, %v729
        %v731 = vpop.f32.mrf.mxu0
        %732 = vdwg.mxu0
        %733 = vmatpush.bf16.msra.mxu0 0
        %734 = vmatpush.bf16.msra.mxu0 0
        %735 = vmatpush.bf16.msra.mxu0 0
        %736 = vmatpush.bf16.msra.mxu0 0
        %737 = vmatpush.bf16.msra.mxu0 0
        %738 = vmatpush.bf16.msra.mxu0 0
        %739 = vmatpush.bf16.msra.mxu0 0
        %740 = vmatpush.bf16.msra.mxu0 %v718
        %741 = vmatmul.bf16.gmra.mxu0 %v712
        %v742 = vpop.f32.mrf.mxu0
        %v743 = vadd.f32 0.0, %v742
        %v744 = vpop.f32.mrf.mxu0
        %745 = vdwg.mxu0
        %v746 = vadd.f32 %v669, %v730
        %v747 = vadd.f32 %v670, %v743
        %v748 = vld [vmem:[#allocation2 + $0x2] sm:$0x3f]
        %s749 = scalar_lea.vmem %s3, 14
        %v750 = vld [vmem:[%s749] sm:$0x3]
        %752 = vst [vmem:[#allocation1] ss:$4 sm:$0xff] %v748
        %v753 = vld.sshfl [vmem:[#allocation1] sm:$0xff pattern:$0x73625140]
        %v755 = vld.sshfl [vmem:[#allocation1 + $0x8] sm:$0xff pattern:$0x73625140]
        %v757 = vld.sshfl [vmem:[#allocation1 + $0x10] sm:$0xff pattern:$0x73625140]
        %759 = vrot.lane.b32.xlu0 %v753, 112
        %v760 = vpop.permute.xlu0 %759
        %761 = vrot.lane.b32.xlu0 %v755, 112
        %v762 = vpop.permute.xlu0 %761
        %763 = vrot.lane.b32.xlu0 %v757, 112
        %v764 = vpop.permute.xlu0 %763
        %vm765 = vcmask 916480
        %v766 = vsel %vm765, %v760, %v762
        %v767 = vsel %vm765, %v762, %v764
        %v769 = vsel %vm308, %v750, 0
        %v772 = vsel %vm312, %v766, 0
        %v775 = vsel %vm312, %v767, 0
        %777 = vmatpush.bf16.msra.mxu0 0
        %778 = vmatpush.bf16.msra.mxu0 0
        %779 = vmatpush.bf16.msra.mxu0 0
        %780 = vmatpush.bf16.msra.mxu0 0
        %781 = vmatpush.bf16.msra.mxu0 0
        %782 = vmatpush.bf16.msra.mxu0 0
        %783 = vmatpush.bf16.msra.mxu0 0
        %784 = vmatpush.bf16.msra.mxu0 %v772
        %785 = vmatmul.bf16.gmra.mxu0 %v769
        %v786 = vpop.f32.mrf.mxu0
        %v787 = vadd.f32 0.0, %v786
        %v788 = vpop.f32.mrf.mxu0
        %789 = vdwg.mxu0
        %790 = vmatpush.bf16.msra.mxu0 0
        %791 = vmatpush.bf16.msra.mxu0 0
        %792 = vmatpush.bf16.msra.mxu0 0
        %793 = vmatpush.bf16.msra.mxu0 0
        %794 = vmatpush.bf16.msra.mxu0 0
        %795 = vmatpush.bf16.msra.mxu0 0
        %796 = vmatpush.bf16.msra.mxu0 0
        %797 = vmatpush.bf16.msra.mxu0 %v775
        %798 = vmatmul.bf16.gmra.mxu0 %v769
        %v799 = vpop.f32.mrf.mxu0
        %v800 = vadd.f32 0.0, %v799
        %v801 = vpop.f32.mrf.mxu0
        %802 = vdwg.mxu0
        %v803 = vadd.f32 %v746, %v787
        %v804 = vadd.f32 %v747, %v800
        %v805 = vld [vmem:[#allocation2 + $0x2] sm:$0x3f]
        %v806 = vunpack.c.l.bf16 %v805
        %v807 = vunpack.c.h.bf16 %v805
        %808 = vrot.lane.b32.xlu0 %v400, 17
        %v809 = vpop.permute.xlu0 %808
        %v810 = vrot.slane %v809, 4
        %vm811 = vcmask 138240
        %v812 = vsel %vm811, %v810, %v809
        %v815 = vmul.f32 %v806, %v812
        %v816 = vmul.f32 %v807, %v810
        %819 = vst [vmem:[#allocation1] ss:$2 sm:$0xff] %v815
        %s820 = scalar_lea.vmem [#allocation1], 16
        %821 = vst [vmem:[%s820] ss:$2 sm:$0xff] %v816
        %v822 = vld.sshfl [vmem:[#allocation1] sm:$0xff pattern:$0x75316420]
        %v823 = vld.sshfl [vmem:[#allocation1 + $0x8] sm:$0xff pattern:$0x75316420]
        %v824 = vld.sshfl [vmem:[#allocation1 + $0x10] sm:$0xff pattern:$0x75316420]
        %v828 = vpack.c.bf16 %v822, %v822
        %v829 = vpack.c.bf16 %v823, %v823
        %v830 = vpack.c.bf16 %v824, %v824
        %s831 = scalar_lea.vmem %s3, 16
        %v832 = vld [vmem:[%s831] sm:$0x3]
        %836 = vrot.lane.b32.xlu0 %v828, 111
        %v837 = vpop.permute.xlu0 %836
        %838 = vrot.lane.b32.xlu0 %v829, 111
        %v839 = vpop.permute.xlu0 %838
        %840 = vrot.lane.b32.xlu0 %v830, 111
        %v841 = vpop.permute.xlu0 %840
        %vm842 = vcmask 908288
        %v843 = vsel %vm842, %v837, %v839
        %v844 = vsel %vm842, %v839, %v841
        %v846 = vsel %vm308, %v832, 0
        %v849 = vsel %vm312, %v843, 0
        %v852 = vsel %vm312, %v844, 0
        %854 = vmatpush.bf16.msra.mxu0 0
        %855 = vmatpush.bf16.msra.mxu0 0
        %856 = vmatpush.bf16.msra.mxu0 0
        %857 = vmatpush.bf16.msra.mxu0 0
        %858 = vmatpush.bf16.msra.mxu0 0
        %859 = vmatpush.bf16.msra.mxu0 0
        %860 = vmatpush.bf16.msra.mxu0 0
        %861 = vmatpush.bf16.msra.mxu0 %v849
        %862 = vmatmul.bf16.gmra.mxu0 %v846
        %v863 = vpop.f32.mrf.mxu0
        %v864 = vadd.f32 0.0, %v863
        %v865 = vpop.f32.mrf.mxu0
        %866 = vdwg.mxu0
        %867 = vmatpush.bf16.msra.mxu0 0
        %868 = vmatpush.bf16.msra.mxu0 0
        %869 = vmatpush.bf16.msra.mxu0 0
        %870 = vmatpush.bf16.msra.mxu0 0
        %871 = vmatpush.bf16.msra.mxu0 0
        %872 = vmatpush.bf16.msra.mxu0 0
        %873 = vmatpush.bf16.msra.mxu0 0
        %874 = vmatpush.bf16.msra.mxu0 %v852
        %875 = vmatmul.bf16.gmra.mxu0 %v846
        %v876 = vpop.f32.mrf.mxu0
        %v877 = vadd.f32 0.0, %v876
        %v878 = vpop.f32.mrf.mxu0
        %879 = vdwg.mxu0
        %v880 = vadd.f32 %v803, %v864
        %v881 = vadd.f32 %v804, %v877
        %v882 = vld [vmem:[%s4] sm:$0x3]
        %v883 = vld [vmem:[%s2] sm:$0xf]
        %885 = vset.pattern.permute.xlu0 2
        %886 = vperm.xlu0 %885, %v883
        %v887 = vpop.permute.xlu0 %886
        %889 = vst [vmem:[#allocation1] ss:$4 sm:$0xff] %v552
        %v890 = vld.sshfl [vmem:[#allocation1] sm:$0xff pattern:$0x73625140]
        %v891 = vld.sshfl [vmem:[#allocation1 + $0x8] sm:$0xff pattern:$0x73625140]
        %v893 = vsel %vm308, %v882, 0
        %v895 = vsel %vm312, %v890, 0
        %v897 = vsel %vm312, %v891, 0
        %899 = vmatpush.bf16.msra.mxu0 0
        %900 = vmatpush.bf16.msra.mxu0 0
        %901 = vmatpush.bf16.msra.mxu0 0
        %902 = vmatpush.bf16.msra.mxu0 0
        %903 = vmatpush.bf16.msra.mxu0 0
        %904 = vmatpush.bf16.msra.mxu0 0
        %905 = vmatpush.bf16.msra.mxu0 0
        %906 = vmatpush.bf16.msra.mxu0 %v895
        %907 = vmatmul.bf16.gmra.mxu0 %v893
        %v908 = vpop.f32.mrf.mxu0
        %v909 = vadd.f32 %v887, %v908
        %v910 = vpop.f32.mrf.mxu0
        %911 = vdwg.mxu0
        %912 = vmatpush.bf16.msra.mxu0 0
        %913 = vmatpush.bf16.msra.mxu0 0
        %914 = vmatpush.bf16.msra.mxu0 0
        %915 = vmatpush.bf16.msra.mxu0 0
        %916 = vmatpush.bf16.msra.mxu0 0
        %917 = vmatpush.bf16.msra.mxu0 0
        %918 = vmatpush.bf16.msra.mxu0 0
        %919 = vmatpush.bf16.msra.mxu0 %v897
        %920 = vmatmul.bf16.gmra.mxu0 %v893
        %v921 = vpop.f32.mrf.mxu0
        %v922 = vadd.f32 %v887, %v921
        %v923 = vpop.f32.mrf.mxu0
        %924 = vdwg.mxu0
        %v925 = vsub.f32 0.0, %v909
        %v926 = vsub.f32 0.0, %v922
        %v927 = vmul.f32 %v925, 1.442695
        %v928 = vpow.pop %v927
        %v929 = vmul.f32 %v926, 1.442695
        %v930 = vpow.pop %v929
        %v931 = vadd.f32 %v928, 1.0
        %v932 = vadd.f32 %v930, 1.0
        %v933 = vrcp.pop %v931
        %v934 = vmul.f32 %v931, %v933
        %v935 = vsub.f32 1.0, %v934
        %v936 = vmul.f32 %v933, %v935
        %v937 = vadd.f32 %v933, %v936
        %vm938 = vweird.f32 %v931
        %vm939 = vweird.f32 %v933
        %vm940 = vmor %vm938, %vm939
        %v941 = vsel %vm940, %v933, %v937
        %v942 = vand.u32 2147483647, %v931
        %vm943 = vcmp.eq.f32.partialorder %v942, 8.507059e+37
        %v944 = vand.u32 %v931, 2147483648
        %v945 = vor.u32 1.1754944e-38, %v944
        %v946 = vsel %vm943, %v945, %v941
        %v947 = vmul.f32 1.0, %v946
        %v948 = vrcp.pop %v932
        %v949 = vmul.f32 %v932, %v948
        %v950 = vsub.f32 1.0, %v949
        %v951 = vmul.f32 %v948, %v950
        %v952 = vadd.f32 %v948, %v951
        %vm953 = vweird.f32 %v932
        %vm954 = vweird.f32 %v948
        %vm955 = vmor %vm953, %vm954
        %v956 = vsel %vm955, %v948, %v952
        %v957 = vand.u32 2147483647, %v932
        %vm958 = vcmp.eq.f32.partialorder %v957, 8.507059e+37
        %v959 = vand.u32 %v932, 2147483648
        %v960 = vor.u32 1.1754944e-38, %v959
        %v961 = vsel %vm958, %v960, %v956
        %v962 = vmul.f32 1.0, %v961
        %v963 = vunpack.c.l.bf16 %v552
        %v964 = vld [vmem:[%s2] sm:$0xf]
        %966 = vset.pattern.permute.xlu0 0
        %967 = vperm.xlu0 %966, %v964
        %v968 = vpop.permute.xlu0 %967
        %v970 = vunpack.c.l.s4 839922192
        %v971 = vunpack.c.0.s8 %v970
        %v972 = vperm.slane %v968, %v971
        %v974 = vmul.f32 %v963, %v972
        %975 = vset.pattern.permute.xlu0 1
        %976 = vperm.xlu0 %975, %v964
        %v977 = vpop.permute.xlu0 %976
        %v979 = vunpack.c.l.s4 839922192
        %v980 = vunpack.c.0.s8 %v979
        %v981 = vperm.slane %v977, %v980
        %v983 = vadd.f32 %v974, %v981
        %v986 = vrot.slane %v962, 4
        %v987 = vsel %vm262, %v947, %v986
        %v989 = vmul.f32 %v983, %v987
        %v992 = vrot.slane %v881, 4
        %v993 = vsel %vm262, %v880, %v992
        %v995 = vadd.f32 %v989, %v993
        %996 = vset.pattern.permute.xlu0 3
        %997 = vperm.xlu0 %996, %v964
        %v998 = vpop.permute.xlu0 %997
        %v1000 = vunpack.c.l.s4 839922192
        %v1001 = vunpack.c.0.s8 %v1000
        %v1002 = vperm.slane %v998, %v1001
        %v1004 = vadd.f32 %v995, %v1002
        %v1005 = vsub.f32 0.0, %v1004
        %v1006 = vmul.f32 %v1005, 1.442695
        %v1007 = vpow.pop %v1006
        %v1008 = vadd.f32 %v1007, 1.0
        %v1009 = vrcp.pop %v1008
        %v1010 = vmul.f32 %v1008, %v1009
        %v1011 = vsub.f32 1.0, %v1010
        %v1012 = vmul.f32 %v1009, %v1011
        %v1013 = vadd.f32 %v1009, %v1012
        %vm1014 = vweird.f32 %v1008
        %vm1015 = vweird.f32 %v1009
        %vm1016 = vmor %vm1014, %vm1015
        %v1017 = vsel %vm1016, %v1009, %v1013
        %v1018 = vand.u32 2147483647, %v1008
        %vm1019 = vcmp.eq.f32.partialorder %v1018, 8.507059e+37
        %v1020 = vand.u32 %v1008, 2147483648
        %v1021 = vor.u32 1.1754944e-38, %v1020
        %v1022 = vsel %vm1019, %v1021, %v1017
        %v1023 = vmul.f32 %v1004, %v1022
        %1025 = vst [vmem:[#allocation1] ss:$2 sm:$0xff] %v1023
        %v1026 = vld.sshfl [vmem:[#allocation1] sm:$0xff pattern:$0x75316420]
        %v1027 = vld.sshfl [vmem:[#allocation1 + $0x8] sm:$0xff pattern:$0x75316420]
        %v1030 = vpack.c.bf16 %v1027, %v1026
        %v1032 = vrot.slane %v1030, 2
        %v1035 = vsel %vm312, %v1030, %v1032
        %1037 = vst [vmem:[%s217] sm:$0xf] %v1035
        %s1038 = sand.u32 %s137, 1
        %s1039 = scalar_lea.sflag [#allocation4], %s1038
        %s1040 = sand.u32 %s137, 1
        %s1041 = smul.addr %s1040, 4
        %s1042 = scalar_lea.vmem [#allocation3], %s1041
        // Predicated region
        $region41: #{tpu_custom_call.1} parent=39 // pred_check
          %p1043 = pneg %p147
        $region42: #{tpu_custom_call.1} parent=39 // pred_check_branch
          %1045 = sbr.rel (%p1043) target = $region44
        $region43: #{tpu_custom_call.1} parent=39 // pred_region
          %1047 = vsyncadd %s1039, 0
          %s1048 = smul.addr %s19, 2
          %s1049 = smul.addr %s1048, 2
          %s1050 = scalar_lea.hbm %s5, %s1049
          %s1052 = sshll.u32 %s1042, 4
          %s1053 = int_to_ptr.vmem [resolvable:$true] %s1052
          %s1054 = sshll.u32 %s1050, 4
          %s1055 = int_to_ptr.hbm [resolvable:$true] %s1054
          %1057 = dma.vmem_to_hbm [thread:$0]  %s1053, 64, %s1055, %s1039
        $region44: #{tpu_custom_call.1} parent=39 // pred_fallthru
          _
      $region40: #{tpu_custom_call.1} parent=5 // pred_fallthru
        _
      %p1058 = scmp.le.s32.totalorder 2, %s14
      // Predicated region
      $region45: #{tpu_custom_call.1} parent=5 // pred_check
        %p1059 = pneg %p1058
      $region46: #{tpu_custom_call.1} parent=5 // pred_check_branch
        %1061 = sbr.rel (%p1059) target = $region48
      $region47: #{tpu_custom_call.1} parent=5 // pred_region
        %s1062 = ssub.s32 %s14, 2
        // Predicated region
        $region49: #{tpu_custom_call.1} parent=47 // pred_check
          %p1063 = pneg %p153
        $region50: #{tpu_custom_call.1} parent=47 // pred_check_branch
          %1065 = sbr.rel (%p1063) target = $region52
        $region51: #{tpu_custom_call.1} parent=47 // pred_region
          %s1066 = sand.u32 %s138, 1
          %s1067 = scalar_lea.sflag [#allocation4], %s1066
          %s1068 = sand.u32 %s138, 1
          %s1069 = smul.addr %s1068, 4
          %s1070 = scalar_lea.vmem [#allocation3], %s1069
          %1072 = dma.done %s1067, 64
        $region52: #{tpu_custom_call.1} parent=47 // pred_fallthru
          _
      $region48: #{tpu_custom_call.1} parent=5 // pred_fallthru
        _
    $region6: #{tpu_custom_call.1} parent=1 // loop_footer
      %s18 = sadd.s32 1, %s14
    $region7: #{tpu_custom_call.1} parent=1 // loop_footer_branch
      %13 = sbr.rel target = $region3
    $region8: #{tpu_custom_call.1} parent=1 // loop_exit
      _
    %1073 = vsyncpa [#allocation4], 1
    %s1074 = scalar_lea.sflag [#allocation4], 1
    %1075 = vsyncpa %s1074, 1

</llo_original>
